<compile_context>
chip_gen: v7x
topology: tpu7x:2x2x1
jax: 0.10.0
libtpu: 0.0.40
codegen_flags: <defaults>
</compile_context>

<pallas_src>
import itertools

import jax
import jax.numpy as jnp
from jax.experimental import pallas as pl
from jax.experimental.pallas import tpu as pltpu

BATCH = 8            # the reference module hardcodes pC / pred to 8 rows
HIDDEN = 32
IN_F = 3
OUT_LANES = 128      # lane-dense packed output width
SLAB_ROWS = 88       # 8 (w1+b1) + 40 (w2+b2) + 40 (w3+b3), 8-row aligned
MAX_TILE_B = 256     # cap per review: keeps the f32 epilogue in-register

EPS_C = 1e-5
EPS_P = 1e-3
INV_DC = 1.0 / (1.0 + 2.0 * EPS_C)
INV_DP = 1.0 / (1.0 + 2.0 * EPS_P)


def dpl_kernel(x_ref, p_ref, out_ref):
    x = x_ref[...]                                          # (TILE_B, 3)

    # Layer 1 (in_features = 3): three VPU MACs + bias add.  No MXU pass and
    # no wrapper-side padding of x.
    w1r0 = p_ref[0:1, 0:HIDDEN]                             # (1, 32)
    w1r1 = p_ref[1:2, 0:HIDDEN]
    w1r2 = p_ref[2:3, 0:HIDDEN]
    b1 = p_ref[3:4, 0:HIDDEN]
    h1 = jnp.maximum(
        x[:, 0:1] * w1r0 + x[:, 1:2] * w1r1 + x[:, 2:3] * w1r2 + b1, 0.0)

    # Layer 2: MXU matmul + single VPU bias add.
    w2 = p_ref[8:8 + HIDDEN, 0:HIDDEN]                      # (32, 32)
    b2 = p_ref[8 + HIDDEN:8 + HIDDEN + 1, 0:HIDDEN]         # (1, 32)
    h2 = jnp.maximum(
        jnp.dot(h1, w2, preferred_element_type=jnp.float32) + b2, 0.0)

    # Layer 3: weights live in lanes 2..4 -> logitC lands in its output lanes.
    w3p = p_ref[48:48 + HIDDEN, :]                          # (32, 128)
    b3p = p_ref[48 + HIDDEN:48 + HIDDEN + 1, :]             # (1, 128)
    logit_pad = jnp.dot(h2, w3p, preferred_element_type=jnp.float32) + b3p

    # pC positive columns (lanes 2..4), eps-normalized via reciprocal constant.
    sig = jax.nn.sigmoid(logit_pad)                         # EUP slot
    p_pos = (sig + EPS_C) * INV_DC

    # Weighted model count over the XOR truth table == exact parity form:
    #   pred1 = P(c0 + c1 + c2 odd) = 0.5 * (1 - prod_m (1 - 2 * p_pos_m))
    q = 1.0 - 2.0 * p_pos
    qprod = q[:, 2:3] * q[:, 3:4] * q[:, 4:5]               # (TILE_B, 1)
    pred1 = 0.5 * (1.0 - qprod)
    pred0 = 1.0 - pred1
    p0 = (pred0 + EPS_P) * INV_DP
    p1 = (pred1 + EPS_P) * INV_DP

    # Lanes 0 and 1 of logit_pad are exactly zero (w3/b3 occupy lanes 2..4
    # only), so the pack is a mask-multiply-add: no full-tile iota / selects.
    lane = jax.lax.broadcasted_iota(jnp.int32, (1, OUT_LANES), 1)
    mask0 = (lane == 0).astype(jnp.float32)                 # (1, 128)
    mask1 = (lane == 1).astype(jnp.float32)
    out_ref[...] = logit_pad + mask0 * p0 + mask1 * p1


def pack_params(w1, b1, w2, b2, w3, b3):
    """Pack all layer params into one (88, 128) f32 slab (one DMA total)."""
    slab = jnp.zeros((SLAB_ROWS, OUT_LANES), jnp.float32)
    slab = slab.at[0:IN_F, 0:HIDDEN].set(w1)                 # rows 0..2
    slab = slab.at[IN_F, 0:HIDDEN].set(b1)                   # row 3
    slab = slab.at[8:8 + HIDDEN, 0:HIDDEN].set(w2)           # rows 8..39
    slab = slab.at[8 + HIDDEN, 0:HIDDEN].set(b2)             # row 40
    slab = slab.at[48:48 + HIDDEN, 2:2 + IN_F].set(w3)       # rows 48..79, lanes 2..4
    slab = slab.at[48 + HIDDEN, 2:2 + IN_F].set(b3)          # row 80, lanes 2..4
    return slab


def dpl_forward(x, slab):
    b = x.shape[0]
    tile_b = min(b, MAX_TILE_B)
    assert b % tile_b == 0, "batch must be a multiple of the row tile"
    packed = pl.pallas_call(
        dpl_kernel,
        out_shape=jax.ShapeDtypeStruct((b, OUT_LANES), jnp.float32),
        grid=(b // tile_b,),
        in_specs=[
            # x passed as-is, (tile_b, 3) blocks; no augmented copy in HBM.
            pl.BlockSpec((tile_b, IN_F), lambda i: (i, 0)),
            # Constant weight slab: whole array resident in VMEM for the whole
            # kernel (single copy, no double-buffered pipelining).
            pl.BlockSpec(memory_space=pltpu.MemorySpace.VMEM),
        ],
        out_specs=pl.BlockSpec((tile_b, OUT_LANES), lambda i: (i, 0)),
        compiler_params=pltpu.CompilerParams(
            dimension_semantics=("parallel",)),
    )(x, slab)
    pred = packed[:, 0:2]
    logitC = packed[:, 2:2 + IN_F]
    return pred, logitC


def init_params(key):
    """Deterministic init mimicking torch.nn.Linear (uniform +-1/sqrt(fan_in)).
    Weights returned as (in_features, out_features)."""
    ks = jax.random.split(key, 6)

    def lin(kw, kb, fan_in, fan_out):
        bound = 1.0 / jnp.sqrt(float(fan_in))
        w = jax.random.uniform(kw, (fan_in, fan_out), jnp.float32, -bound, bound)
        b = jax.random.uniform(kb, (fan_out,), jnp.float32, -bound, bound)
        return w, b

    w1, b1 = lin(ks[0], ks[1], IN_F, HIDDEN)
    w2, b2 = lin(ks[2], ks[3], HIDDEN, HIDDEN)
    w3, b3 = lin(ks[4], ks[5], HIDDEN, IN_F)
    return w1, b1, w2, b2, w3, b3


def dpl_reference(x, w1, b1, w2, b2, w3, b3):
    """Plain-JAX reference mirroring the PyTorch forward literally."""
    n = x.shape[0]
    h1 = jnp.maximum(x @ w1 + b1, 0.0)
    h2 = jnp.maximum(h1 @ w2 + b2, 0.0)
    logitC = h2 @ w3 + b3
    sig = jax.nn.sigmoid(logitC)
    pC = jnp.zeros((n, 6), jnp.float32)
    for i in range(3):
        pC = pC.at[:, 2 * i].set((1.0 - sig[:, i] + EPS_C) / (1.0 + 2 * EPS_C))
        pC = pC.at[:, 2 * i + 1].set((sig[:, i] + EPS_C) / (1.0 + 2 * EPS_C))
    pred1 = jnp.zeros((n,), jnp.float32)
    for i, j, k in itertools.product(range(2), range(2), range(2)):
        w = 1.0 if (i + j + k + 1) % 2 == 0 else 0.0
        pred1 = pred1 + pC[:, i] * pC[:, 2 + j] * pC[:, 4 + k] * w
    pred = jnp.stack([1.0 - pred1, pred1], axis=1)
    pred = (pred + EPS_P) / (1.0 + 2 * EPS_P)
    return pred, logitC


if __name__ == "__main__":
    key = jax.random.PRNGKey(0)
    kx, kp = jax.random.split(key)
    x = jax.random.normal(kx, (BATCH, IN_F), jnp.float32)
    params = init_params(kp)
    slab = pack_params(*params)

    pred, logitC = dpl_forward(x, slab)
    jax.block_until_ready((pred, logitC))

    pred_ref, logit_ref = dpl_reference(x, *params)
    assert jnp.allclose(pred, pred_ref, atol=1e-5), "pred mismatch"
    assert jnp.allclose(logitC, logit_ref, atol=1e-5), "logitC mismatch"

    print("KERNEL_OK")
</pallas_src>

<mosaic_0001>
module attributes {stable_mosaic.version = 11 : i64} {
  func.func @dpl_kernel(%arg0: i32, %arg1: memref<8x3xf32, #tpu.memory_space<vmem>>, %arg2: memref<88x128xf32, #tpu.memory_space<vmem>>, %arg3: memref<8x128xf32, #tpu.memory_space<vmem>>) attributes {dimension_semantics = [#tpu.dimension_semantics<parallel>], iteration_bounds = array<i64: 1>, scalar_prefetch = 0 : i64, scratch_operands = 0 : i64, tpu.core_type = #tpu.core_type<tc>, window_params = [{transform_indices = @transform_0, window_bounds = array<i64: 8, 3>}, {pipeline_mode = #tpu.pipeline_mode<synchronous>, transform_indices = @transform_1, window_bounds = array<i64: 88, 128>}, {transform_indices = @transform_2, window_bounds = array<i64: 8, 128>}]} {
    %c0 = arith.constant 0 : index
    %c0_0 = arith.constant 0 : index
    %0 = vector.load %arg1[%c0, %c0_0] : memref<8x3xf32, #tpu.memory_space<vmem>>, vector<8x3xf32>
    %c0_1 = arith.constant 0 : index
    %c0_2 = arith.constant 0 : index
    %1 = vector.load %arg2[%c0_1, %c0_2] : memref<88x128xf32, #tpu.memory_space<vmem>>, vector<1x32xf32>
    %c1 = arith.constant 1 : index
    %c0_3 = arith.constant 0 : index
    %2 = vector.load %arg2[%c1, %c0_3] : memref<88x128xf32, #tpu.memory_space<vmem>>, vector<1x32xf32>
    %c2 = arith.constant 2 : index
    %c0_4 = arith.constant 0 : index
    %3 = vector.load %arg2[%c2, %c0_4] : memref<88x128xf32, #tpu.memory_space<vmem>>, vector<1x32xf32>
    %c3 = arith.constant 3 : index
    %c0_5 = arith.constant 0 : index
    %4 = vector.load %arg2[%c3, %c0_5] : memref<88x128xf32, #tpu.memory_space<vmem>>, vector<1x32xf32>
    %5 = vector.extract_strided_slice %0 {offsets = [0, 0], sizes = [8, 1], strides = [1, 1]} : vector<8x3xf32> to vector<8x1xf32>
    %6 = vector.broadcast %5 : vector<8x1xf32> to vector<8x32xf32>
    %7 = vector.broadcast %1 : vector<1x32xf32> to vector<8x32xf32>
    %8 = arith.mulf %6, %7 : vector<8x32xf32>
    %9 = vector.extract_strided_slice %0 {offsets = [0, 1], sizes = [8, 1], strides = [1, 1]} : vector<8x3xf32> to vector<8x1xf32>
    %10 = vector.broadcast %9 : vector<8x1xf32> to vector<8x32xf32>
    %11 = vector.broadcast %2 : vector<1x32xf32> to vector<8x32xf32>
    %12 = arith.mulf %10, %11 : vector<8x32xf32>
    %13 = arith.addf %8, %12 : vector<8x32xf32>
    %14 = vector.extract_strided_slice %0 {offsets = [0, 2], sizes = [8, 1], strides = [1, 1]} : vector<8x3xf32> to vector<8x1xf32>
    %15 = vector.broadcast %14 : vector<8x1xf32> to vector<8x32xf32>
    %16 = vector.broadcast %3 : vector<1x32xf32> to vector<8x32xf32>
    %17 = arith.mulf %15, %16 : vector<8x32xf32>
    %18 = arith.addf %13, %17 : vector<8x32xf32>
    %19 = vector.broadcast %4 : vector<1x32xf32> to vector<8x32xf32>
    %20 = arith.addf %18, %19 : vector<8x32xf32>
    %cst = arith.constant 0.000000e+00 : f32
    %21 = vector.broadcast %cst : f32 to vector<8x32xf32>
    %22 = arith.maximumf %20, %21 : vector<8x32xf32>
    %c8 = arith.constant 8 : index
    %c0_6 = arith.constant 0 : index
    %23 = vector.load %arg2[%c8, %c0_6] : memref<88x128xf32, #tpu.memory_space<vmem>>, vector<32x32xf32>
    %c40 = arith.constant 40 : index
    %c0_7 = arith.constant 0 : index
    %24 = vector.load %arg2[%c40, %c0_7] : memref<88x128xf32, #tpu.memory_space<vmem>>, vector<1x32xf32>
    %cst_8 = arith.constant dense<0.000000e+00> : vector<8x32xf32>
    %25 = tpu.matmul %22, %23, %cst_8 {dimension_numbers = #tpu.dot_dimension_numbers<[1], [0], [0], [1], [0, 0, 1, 1], [], []>} : vector<8x32xf32>, vector<32x32xf32>, vector<8x32xf32> -> vector<8x32xf32>
    %26 = vector.broadcast %24 : vector<1x32xf32> to vector<8x32xf32>
    %27 = arith.addf %25, %26 : vector<8x32xf32>
    %cst_9 = arith.constant 0.000000e+00 : f32
    %28 = vector.broadcast %cst_9 : f32 to vector<8x32xf32>
    %29 = arith.maximumf %27, %28 : vector<8x32xf32>
    %c48 = arith.constant 48 : index
    %c0_10 = arith.constant 0 : index
    %30 = vector.load %arg2[%c48, %c0_10] : memref<88x128xf32, #tpu.memory_space<vmem>>, vector<32x128xf32>
    %c80 = arith.constant 80 : index
    %c0_11 = arith.constant 0 : index
    %31 = vector.load %arg2[%c80, %c0_11] : memref<88x128xf32, #tpu.memory_space<vmem>>, vector<1x128xf32>
    %cst_12 = arith.constant dense<0.000000e+00> : vector<8x128xf32>
    %32 = tpu.matmul %29, %30, %cst_12 {dimension_numbers = #tpu.dot_dimension_numbers<[1], [0], [0], [1], [0, 0, 1, 1], [], []>} : vector<8x32xf32>, vector<32x128xf32>, vector<8x128xf32> -> vector<8x128xf32>
    %33 = vector.broadcast %31 : vector<1x128xf32> to vector<8x128xf32>
    %34 = arith.addf %32, %33 : vector<8x128xf32>
    %35 = arith.negf %34 : vector<8x128xf32>
    %36 = math.exp %35 : vector<8x128xf32>
    %cst_13 = arith.constant 1.000000e+00 : f32
    %37 = vector.broadcast %cst_13 : f32 to vector<8x128xf32>
    %38 = arith.addf %37, %36 : vector<8x128xf32>
    %39 = arith.divf %37, %38 : vector<8x128xf32>
    %cst_14 = arith.constant 9.99999974E-6 : f32
    %40 = vector.broadcast %cst_14 : f32 to vector<8x128xf32>
    %41 = arith.addf %39, %40 : vector<8x128xf32>
    %cst_15 = arith.constant 0.999979972 : f32
    %42 = vector.broadcast %cst_15 : f32 to vector<8x128xf32>
    %43 = arith.mulf %41, %42 : vector<8x128xf32>
    %cst_16 = arith.constant 2.000000e+00 : f32
    %44 = vector.broadcast %cst_16 : f32 to vector<8x128xf32>
    %45 = arith.mulf %44, %43 : vector<8x128xf32>
    %cst_17 = arith.constant 1.000000e+00 : f32
    %46 = vector.broadcast %cst_17 : f32 to vector<8x128xf32>
    %47 = arith.subf %46, %45 : vector<8x128xf32>
    %48 = vector.extract_strided_slice %47 {offsets = [0, 2], sizes = [8, 1], strides = [1, 1]} : vector<8x128xf32> to vector<8x1xf32>
    %49 = vector.extract_strided_slice %47 {offsets = [0, 3], sizes = [8, 1], strides = [1, 1]} : vector<8x128xf32> to vector<8x1xf32>
    %50 = arith.mulf %48, %49 : vector<8x1xf32>
    %51 = vector.extract_strided_slice %47 {offsets = [0, 4], sizes = [8, 1], strides = [1, 1]} : vector<8x128xf32> to vector<8x1xf32>
    %52 = arith.mulf %50, %51 : vector<8x1xf32>
    %cst_18 = arith.constant 1.000000e+00 : f32
    %53 = vector.broadcast %cst_18 : f32 to vector<8x1xf32>
    %54 = arith.subf %53, %52 : vector<8x1xf32>
    %cst_19 = arith.constant 5.000000e-01 : f32
    %55 = vector.broadcast %cst_19 : f32 to vector<8x1xf32>
    %56 = arith.mulf %55, %54 : vector<8x1xf32>
    %cst_20 = arith.constant 1.000000e+00 : f32
    %57 = vector.broadcast %cst_20 : f32 to vector<8x1xf32>
    %58 = arith.subf %57, %56 : vector<8x1xf32>
    %cst_21 = arith.constant 1.000000e-03 : f32
    %59 = vector.broadcast %cst_21 : f32 to vector<8x1xf32>
    %60 = arith.addf %58, %59 : vector<8x1xf32>
    %cst_22 = arith.constant 9.980040e-01 : f32
    %61 = vector.broadcast %cst_22 : f32 to vector<8x1xf32>
    %62 = arith.mulf %60, %61 : vector<8x1xf32>
    %cst_23 = arith.constant 1.000000e-03 : f32
    %63 = vector.broadcast %cst_23 : f32 to vector<8x1xf32>
    %64 = arith.addf %56, %63 : vector<8x1xf32>
    %cst_24 = arith.constant 9.980040e-01 : f32
    %65 = vector.broadcast %cst_24 : f32 to vector<8x1xf32>
    %66 = arith.mulf %64, %65 : vector<8x1xf32>
    %67 = tpu.iota {dimensions = array<i32: 1>} : vector<1x128xi32>
    %c0_i32 = arith.constant 0 : i32
    %68 = vector.broadcast %c0_i32 : i32 to vector<1x128xi32>
    %69 = arith.cmpi eq, %67, %68 : vector<1x128xi32>
    %70 = arith.extui %69 : vector<1x128xi1> to vector<1x128xi32>
    %71 = arith.sitofp %70 : vector<1x128xi32> to vector<1x128xf32>
    %c1_i32 = arith.constant 1 : i32
    %72 = vector.broadcast %c1_i32 : i32 to vector<1x128xi32>
    %73 = arith.cmpi eq, %67, %72 : vector<1x128xi32>
    %74 = arith.extui %73 : vector<1x128xi1> to vector<1x128xi32>
    %75 = arith.sitofp %74 : vector<1x128xi32> to vector<1x128xf32>
    %76 = vector.broadcast %71 : vector<1x128xf32> to vector<8x128xf32>
    %77 = vector.broadcast %62 : vector<8x1xf32> to vector<8x128xf32>
    %78 = arith.mulf %76, %77 : vector<8x128xf32>
    %79 = arith.addf %34, %78 : vector<8x128xf32>
    %80 = vector.broadcast %75 : vector<1x128xf32> to vector<8x128xf32>
    %81 = vector.broadcast %66 : vector<8x1xf32> to vector<8x128xf32>
    %82 = arith.mulf %80, %81 : vector<8x128xf32>
    %83 = arith.addf %79, %82 : vector<8x128xf32>
    %c0_25 = arith.constant 0 : index
    %c0_26 = arith.constant 0 : index
    %84 = vector.load %arg3[%c0_25, %c0_26] : memref<8x128xf32, #tpu.memory_space<vmem>>, vector<8x128xf32>
    tpu.vector_store %arg3[%c0_25, %c0_26], %83 {strides = array<i32>} : memref<8x128xf32, #tpu.memory_space<vmem>>, vector<8x128xf32>,
    return
  }
  func.func @transform_0(%arg0: i32) -> (i32, i32) {
    %c0_i32 = arith.constant 0 : i32
    %c0_i32_0 = arith.constant 0 : i32
    return %arg0, %c0_i32 : i32, i32
  }
  func.func @transform_1(%arg0: i32) -> (i32, i32) {
    %c0_i32 = arith.constant 0 : i32
    %c0_i32_0 = arith.constant 0 : i32
    %c0_i32_1 = arith.constant 0 : i32
    return %c0_i32, %c0_i32_0 : i32, i32
  }
  func.func @transform_2(%arg0: i32) -> (i32, i32) {
    %c0_i32 = arith.constant 0 : i32
    %c0_i32_0 = arith.constant 0 : i32
    return %arg0, %c0_i32 : i32, i32
  }
}

</mosaic_0001>

<llo_original>
// kernel: tpu_custom_call.1
$region0: #{tpu_custom_call.1}
  #allocation0 [shape = 'u32[]', space=smem, size = 0x4, offset = 0x4, fixed_abs, tag = 'smem constant byte address 0x4 - core index']
  #allocation1 [shape = 'u32[144,128]{1,0:T(1,128)}', space=vmem, size = 0x12000, scoped, tag = 'internal scratch']
  %s0 = inlined_call_operand.vmem [shape: f32[8,3], index: 0, kind: input, shape index: {}]
  %s1 = inlined_call_operand.hbm [shape: f32[88,128], index: 1, kind: input, shape index: {}]
  %s2 = inlined_call_operand.hbm [shape: f32[8,128], index: 2, kind: output, shape index: {}]
  %s3 = sld [smem:[#allocation0]]
  $region22: #{tpu_custom_call.1} parent=0
    _
  %s5 = ssub.s32 1, %s3
  %s6 = scalar_select 0, %s5, %s3
  $region1: #{tpu_custom_call.1} parent=0
    #allocation2 [shape = 'u8[45056]{0}', space=vmem, size = 0xb000, scoped, tag = 'input window, operand 1, single buffered']
    #allocation3 [shape = 's32[1]{0}', space=sflag, size = 0x4, scoped, tag = 'scoped memory for tpu_custom_call.1']
    #allocation4 [shape = 's32[1]{0}', space=sflag, size = 0x4, scoped, tag = 'scoped memory for tpu_custom_call.1']
    #allocation5 [shape = 'u8[4096]{0}', space=vmem, size = 0x1000, scoped, tag = 'output window, operand 0, single buffered']
    %7 = vsyncpa [#allocation3], 0
    %8 = vsyncpa [#allocation4], 0
    // Predicated region
    $region2: #{tpu_custom_call.1} parent=1 // pred_check
      _
    $region3: #{tpu_custom_call.1} parent=1 // pred_check_branch
      %10 = sbr.rel (0) target = $region5
    $region4: #{tpu_custom_call.1} parent=1 // pred_region
      _
    $region5: #{tpu_custom_call.1} parent=1 // pred_fallthru
      _
    // Predicated region
    $region6: #{tpu_custom_call.1} parent=1 // pred_check
      _
    $region7: #{tpu_custom_call.1} parent=1 // pred_check_branch
      %12 = sbr.rel (0) target = $region9
    $region8: #{tpu_custom_call.1} parent=1 // pred_region
      %s14 = ssub.s32 1408, 1408
      %15 = vsyncadd [#allocation3], %s14
      %s16 = sshll.u32 [#allocation2], 4
      %s17 = int_to_ptr.vmem [resolvable:$true] %s16
      %22 = dma.hbm_to_vmem [thread:$0]  %s1, 1408, %s17, [#allocation3], 128, 128, 8
    $region9: #{tpu_custom_call.1} parent=1 // pred_fallthru
      _
    // Predicated region
    $region10: #{tpu_custom_call.1} parent=1 // pred_check
      _
    $region11: #{tpu_custom_call.1} parent=1 // pred_check_branch
      %24 = sbr.rel (0) target = $region13
    $region12: #{tpu_custom_call.1} parent=1 // pred_region
      %25 = dma.done [#allocation3], 1408
    $region13: #{tpu_custom_call.1} parent=1 // pred_fallthru
      _
    %v26 = vld [vmem:[%s0] sm:$0xff]
    %v27 = vld [vmem:[#allocation2] sm:$0x1]
    %v28 = vld [vmem:[#allocation2 + $0x1] sm:$0x1]
    %v29 = vld [vmem:[#allocation2 + $0x2] sm:$0x1]
    %v30 = vld [vmem:[#allocation2 + $0x3] sm:$0x1]
    %32 = vset.pattern.permute.xlu0 0
    %33 = vperm.xlu0 %32, %v26
    %v34 = vpop.permute.xlu0 %33
    %v36 = vlaneseq
    %v37 = vshrl.u32 %v36, 7
    %v38 = vsub.s32 0, %v37
    %v39 = vrot.slane %v27, %v38
    %v40 = vmul.f32 %v34, %v39
    %41 = vset.pattern.permute.xlu0 1
    %42 = vperm.xlu0 %41, %v26
    %v43 = vpop.permute.xlu0 %42
    %v45 = vlaneseq
    %v46 = vshrl.u32 %v45, 7
    %v47 = vsub.s32 0, %v46
    %v48 = vrot.slane %v28, %v47
    %v49 = vmul.f32 %v43, %v48
    %v50 = vadd.f32 %v40, %v49
    %51 = vset.pattern.permute.xlu0 2
    %52 = vperm.xlu0 %51, %v26
    %v53 = vpop.permute.xlu0 %52
    %v55 = vlaneseq
    %v56 = vshrl.u32 %v55, 7
    %v57 = vsub.s32 0, %v56
    %v58 = vrot.slane %v29, %v57
    %v59 = vmul.f32 %v53, %v58
    %v60 = vadd.f32 %v50, %v59
    %v61 = vlaneseq
    %v62 = vshrl.u32 %v61, 7
    %v63 = vsub.s32 0, %v62
    %v64 = vrot.slane %v30, %v63
    %v65 = vadd.f32 %v60, %v64
    %v66 = vmax.f32 %v65, 0.0
    %v67 = vld [vmem:[#allocation2 + $0x8] sm:$0xff]
    %v68 = vld [vmem:[#allocation2 + $0x10] sm:$0xff]
    %v69 = vld [vmem:[#allocation2 + $0x18] sm:$0xff]
    %v70 = vld [vmem:[#allocation2 + $0x20] sm:$0xff]
    %v71 = vld [vmem:[#allocation2 + $0x28] sm:$0x1]
    %v72 = vlaneseq
    %v73 = vshrl.u32 %v72, 7
    %v74 = vsub.s32 0, %v73
    %v75 = vrot.slane %v71, %v74
    %vm76 = vcmask 261120
    %v78 = vsel %vm76, %v66, 0
    %80 = vmatprep.subr.mxu0 0.0
    %81 = vmatpush1.msra.mxu0 %v67
    %82 = vmatprep.subr.mxu0 0.0
    %83 = vmatpush1.msra.mxu0 %v68
    %84 = vmatprep.subr.mxu0 0.0
    %85 = vmatpush1.msra.mxu0 %v69
    %86 = vmatprep.subr.mxu0 0.0
    %87 = vmatpush1.msra.mxu0 %v70
    %88 = vmatprep.subr.mxu0 0.0
    %89 = vmatpush1.msra.mxu0 0.0
    %90 = vmatprep.subr.mxu0 0.0
    %91 = vmatpush1.msra.mxu0 0.0
    %92 = vmatprep.subr.mxu0 0.0
    %93 = vmatpush1.msra.mxu0 0.0
    %94 = vmatprep.subr.mxu0 0.0
    %95 = vmatpush1.msra.mxu0 0.0
    %96 = vmatprep.subr.mxu0 0.0
    %97 = vmatpush1.msra.mxu0 0.0
    %98 = vmatprep.subr.mxu0 0.0
    %99 = vmatpush1.msra.mxu0 0.0
    %100 = vmatprep.subr.mxu0 0.0
    %101 = vmatpush1.msra.mxu0 0.0
    %102 = vmatprep.subr.mxu0 0.0
    %103 = vmatpush1.msra.mxu0 0.0
    %104 = vmatprep.subr.mxu0 0.0
    %105 = vmatpush1.msra.mxu0 0.0
    %106 = vmatprep.subr.mxu0 0.0
    %107 = vmatpush1.msra.mxu0 0.0
    %108 = vmatprep.subr.mxu0 0.0
    %109 = vmatpush1.msra.mxu0 0.0
    %110 = vmatprep.subr.mxu0 0.0
    %111 = vmatpush1.msra.mxu0 0.0
    %112 = vmatprep.subr.mxu0 0.0
    %113 = vmatpush1.msra.mxu0 0.0
    %114 = vmatprep.subr.mxu0 0.0
    %115 = vmatpush1.msra.mxu0 0.0
    %116 = vmatprep.subr.mxu0 0.0
    %117 = vmatpush1.msra.mxu0 0.0
    %118 = vmatprep.subr.mxu0 0.0
    %119 = vmatpush1.msra.mxu0 0.0
    %120 = vmatprep.subr.mxu0 0.0
    %121 = vmatpush1.msra.mxu0 0.0
    %122 = vmatprep.subr.mxu0 0.0
    %123 = vmatpush1.msra.mxu0 0.0
    %124 = vmatprep.subr.mxu0 0.0
    %125 = vmatpush1.msra.mxu0 0.0
    %126 = vmatprep.subr.mxu0 0.0
    %127 = vmatpush1.msra.mxu0 0.0
    %128 = vmatprep.subr.mxu0 0.0
    %129 = vmatpush1.msra.mxu0 0.0
    %130 = vmatprep.subr.mxu0 0.0
    %131 = vmatpush1.msra.mxu0 0.0
    %132 = vmatprep.subr.mxu0 0.0
    %133 = vmatpush1.msra.mxu0 0.0
    %134 = vmatprep.subr.mxu0 0.0
    %135 = vmatpush1.msra.mxu0 0.0
    %136 = vmatprep.subr.mxu0 0.0
    %137 = vmatpush1.msra.mxu0 0.0
    %138 = vmatprep.subr.mxu0 0.0
    %139 = vmatpush1.msra.mxu0 0.0
    %140 = vmatprep.subr.mxu0 0.0
    %141 = vmatpush1.msra.mxu0 0.0
    %142 = vmatprep.subr.mxu0 0.0
    %143 = vmatpush1.msra.mxu0 0.0
    %144 = vmatprep.mubr.f32.mxu0 0.0
    %145 = vmatmul.mubr.f32.gmra.mrb[0].mxu0 %v78
    %v146 = vpop.f32.mrb[0].mxu0
    %v147 = vadd.f32 %v75, %v146
    %v148 = vpop.f32.mrb[0].mxu0
    %149 = vdwg.mxu0
    %v150 = vmax.f32 %v147, 0.0
    %v151 = vld [vmem:[#allocation2 + $0x30] sm:$0xff]
    %v152 = vld [vmem:[#allocation2 + $0x38] sm:$0xff]
    %v153 = vld [vmem:[#allocation2 + $0x40] sm:$0xff]
    %v154 = vld [vmem:[#allocation2 + $0x48] sm:$0xff]
    %v155 = vld [vmem:[#allocation2 + $0x50] sm:$0x1]
    %v156 = vlaneseq
    %v157 = vshrl.u32 %v156, 7
    %v158 = vsub.s32 0, %v157
    %v159 = vrot.slane %v155, %v158
    %v161 = vsel %vm76, %v150, 0
    %163 = vmatprep.subr.mxu0 0.0
    %164 = vmatpush1.msra.mxu0 %v151
    %165 = vmatprep.subr.mxu0 0.0
    %166 = vmatpush1.msra.mxu0 %v152
    %167 = vmatprep.subr.mxu0 0.0
    %168 = vmatpush1.msra.mxu0 %v153
    %169 = vmatprep.subr.mxu0 0.0
    %170 = vmatpush1.msra.mxu0 %v154
    %171 = vmatprep.subr.mxu0 0.0
    %172 = vmatpush1.msra.mxu0 0.0
    %173 = vmatprep.subr.mxu0 0.0
    %174 = vmatpush1.msra.mxu0 0.0
    %175 = vmatprep.subr.mxu0 0.0
    %176 = vmatpush1.msra.mxu0 0.0
    %177 = vmatprep.subr.mxu0 0.0
    %178 = vmatpush1.msra.mxu0 0.0
    %179 = vmatprep.subr.mxu0 0.0
    %180 = vmatpush1.msra.mxu0 0.0
    %181 = vmatprep.subr.mxu0 0.0
    %182 = vmatpush1.msra.mxu0 0.0
    %183 = vmatprep.subr.mxu0 0.0
    %184 = vmatpush1.msra.mxu0 0.0
    %185 = vmatprep.subr.mxu0 0.0
    %186 = vmatpush1.msra.mxu0 0.0
    %187 = vmatprep.subr.mxu0 0.0
    %188 = vmatpush1.msra.mxu0 0.0
    %189 = vmatprep.subr.mxu0 0.0
    %190 = vmatpush1.msra.mxu0 0.0
    %191 = vmatprep.subr.mxu0 0.0
    %192 = vmatpush1.msra.mxu0 0.0
    %193 = vmatprep.subr.mxu0 0.0
    %194 = vmatpush1.msra.mxu0 0.0
    %195 = vmatprep.subr.mxu0 0.0
    %196 = vmatpush1.msra.mxu0 0.0
    %197 = vmatprep.subr.mxu0 0.0
    %198 = vmatpush1.msra.mxu0 0.0
    %199 = vmatprep.subr.mxu0 0.0
    %200 = vmatpush1.msra.mxu0 0.0
    %201 = vmatprep.subr.mxu0 0.0
    %202 = vmatpush1.msra.mxu0 0.0
    %203 = vmatprep.subr.mxu0 0.0
    %204 = vmatpush1.msra.mxu0 0.0
    %205 = vmatprep.subr.mxu0 0.0
    %206 = vmatpush1.msra.mxu0 0.0
    %207 = vmatprep.subr.mxu0 0.0
    %208 = vmatpush1.msra.mxu0 0.0
    %209 = vmatprep.subr.mxu0 0.0
    %210 = vmatpush1.msra.mxu0 0.0
    %211 = vmatprep.subr.mxu0 0.0
    %212 = vmatpush1.msra.mxu0 0.0
    %213 = vmatprep.subr.mxu0 0.0
    %214 = vmatpush1.msra.mxu0 0.0
    %215 = vmatprep.subr.mxu0 0.0
    %216 = vmatpush1.msra.mxu0 0.0
    %217 = vmatprep.subr.mxu0 0.0
    %218 = vmatpush1.msra.mxu0 0.0
    %219 = vmatprep.subr.mxu0 0.0
    %220 = vmatpush1.msra.mxu0 0.0
    %221 = vmatprep.subr.mxu0 0.0
    %222 = vmatpush1.msra.mxu0 0.0
    %223 = vmatprep.subr.mxu0 0.0
    %224 = vmatpush1.msra.mxu0 0.0
    %225 = vmatprep.subr.mxu0 0.0
    %226 = vmatpush1.msra.mxu0 0.0
    %227 = vmatprep.mubr.f32.mxu0 0.0
    %228 = vmatmul.mubr.f32.gmra.mrb[0].mxu0 %v161
    %v229 = vpop.f32.mrb[0].mxu0
    %v230 = vadd.f32 %v159, %v229
    %v231 = vpop.f32.mrb[0].mxu0
    %232 = vdwg.mxu0
    %v233 = vxor.u32 %v230, 2147483648
    %v234 = vmul.f32 %v233, 1.442695
    %v235 = vpow.pop %v234
    %v236 = vadd.f32 %v235, 1.0
    %v237 = vrcp.pop %v236
    %v238 = vmul.f32 1.0, %v237
    %v239 = vadd.f32 %v238, 1e-05
    %v240 = vmul.f32 %v239, 0.99998
    %v241 = vmul.f32 %v240, 2.0
    %v242 = vsub.f32 1.0, %v241
    %244 = vrot.lane.b32.xlu0 %v242, 127
    %v245 = vpop.permute.xlu0 %244
    %v247 = vmul.f32 %v242, %v245
    %248 = vrot.lane.b32.xlu0 %v242, 126
    %v249 = vpop.permute.xlu0 %248
    %v251 = vmul.f32 %v247, %v249
    %v252 = vsub.f32 1.0, %v251
    %v253 = vmul.f32 %v252, 0.5
    %v254 = vsub.f32 1.0, %v253
    %v255 = vadd.f32 %v254, 0.001
    %v256 = vmul.f32 %v255, 0.998004
    %v257 = vadd.f32 %v253, 0.001
    %v258 = vmul.f32 %v257, 0.998004
    %v259 = vlaneseq
    %v260 = vand.u32 %v259, 127
    %vm261 = vcmp.eq.s32.totalorder %v260, 0
    %v262 = vsel %vm261, 1, 0
    %v263 = vcvt.s32.f32 %v262
    %vm264 = vcmp.eq.s32.totalorder %v260, 1
    %v265 = vsel %vm264, 1, 0
    %v266 = vcvt.s32.f32 %v265
    %268 = vset.pattern.permute.xlu0 2
    %269 = vperm.xlu0 %268, %v256
    %v270 = vpop.permute.xlu0 %269
    %v272 = vmul.f32 %v263, %v270
    %v273 = vadd.f32 %v230, %v272
    %275 = vset.pattern.permute.xlu0 2
    %276 = vperm.xlu0 %275, %v258
    %v277 = vpop.permute.xlu0 %276
    %v279 = vmul.f32 %v266, %v277
    %v280 = vadd.f32 %v273, %v279
    %281 = vst [vmem:[#allocation5] sm:$0xff] %v280
    // Predicated region
    $region14: #{tpu_custom_call.1} parent=1 // pred_check
      _
    $region15: #{tpu_custom_call.1} parent=1 // pred_check_branch
      %283 = sbr.rel (0) target = $region17
    $region16: #{tpu_custom_call.1} parent=1 // pred_region
      %s285 = ssub.s32 128, 128
      %286 = vsyncadd [#allocation4], %s285
      %s288 = sshll.u32 [#allocation5], 4
      %s289 = int_to_ptr.vmem [resolvable:$true] %s288
      %291 = dma.vmem_to_hbm [thread:$0]  %s289, 128, %s2, [#allocation4]
    $region17: #{tpu_custom_call.1} parent=1 // pred_fallthru
      _
    // Predicated region
    $region18: #{tpu_custom_call.1} parent=1 // pred_check
      _
    $region19: #{tpu_custom_call.1} parent=1 // pred_check_branch
      %293 = sbr.rel (0) target = $region21
    $region20: #{tpu_custom_call.1} parent=1 // pred_region
      %294 = dma.done [#allocation4], 128
    $region21: #{tpu_custom_call.1} parent=1 // pred_fallthru
      _
    %295 = vsyncpa [#allocation3], 1
    %296 = vsyncpa [#allocation4], 1

</llo_original>
